<compile_context>
chip_gen: v7x
topology: tpu7x:2x2x1
jax: 0.10.0
libtpu: 0.0.40
codegen_flags: <defaults>
</compile_context>

<pallas_src>
import math
from functools import partial

import jax
import jax.numpy as jnp
from jax.experimental import pallas as pl
from jax.experimental.pallas import tpu as pltpu

_SQRT_2_OVER_PI = math.sqrt(2.0 / math.pi)
# Fused, pre-negated constants:  z = -2*sqrt(2/pi)*(x + 0.044715*x^3)
#   0.5*x*(1 + tanh(sqrt(2/pi)*(x + 0.044715*x^3))) == x / (1 + exp(z))
_NA = -2.0 * _SQRT_2_OVER_PI
_NB = -2.0 * _SQRT_2_OVER_PI * 0.044715


def _gelu_kernel(x_ref, o_ref, *, approx_recip: bool):
    # Load in native dtype, compute in f32 in-vreg, store native.
    x = x_ref[...].astype(jnp.float32)
    x2 = x * x
    z = jnp.float32(_NA) * x + jnp.float32(_NB) * (x2 * x)   # 5 VALU ops
    t = jnp.exp(z)                                            # EUP
    # sigmoid(-z) = 1/(1+exp(z)); exact reciprocal for f32, approx (EUP) otherwise
    y = x * pl.reciprocal(jnp.float32(1.0) + t, approx=approx_recip)
    o_ref[...] = y.astype(o_ref.dtype)


def _gelu_host(x):
    """Plain-jnp reference formula, used only for tiny tails (< 128 elems)."""
    xf = x.astype(jnp.float32)
    y = 0.5 * xf * (1.0 + jnp.tanh(_SQRT_2_OVER_PI * (xf + 0.044715 * xf * xf * xf)))
    return y.astype(x.dtype)


def _pick_cols(n: int, max_cols: int = 8192) -> int:
    """Largest multiple-of-128 divisor of n (<= max_cols); 0 if none exists."""
    start = (min(n, max_cols) // 128) * 128
    for c in range(start, 127, -128):
        if n % c == 0:
            return c
    return 0


def _run_gelu_2d(x2d, dtype, approx_recip, target_block_bytes):
    rows, cols = x2d.shape
    itemsize = jnp.dtype(dtype).itemsize
    n = rows * cols
    total_bytes = n * itemsize
    # Sublane-packing alignment: f32 -> 8 rows, bf16 -> 16, int8/fp8 -> 32.
    align = 8 * max(1, 4 // itemsize)

    block_rows = max(align, (target_block_bytes // (cols * itemsize)) // align * align)
    if block_rows >= rows:
        if total_bytes > (1 << 20) and rows >= 2 * align:
            # Keep >= 2 grid steps so both v7x TensorCores are used.
            block_rows = max(align, pl.cdiv(pl.cdiv(rows, 2), align) * align)
        else:
            block_rows = rows  # single full-extent block (small array)
    grid = pl.cdiv(rows, block_rows)  # last block may overhang; Pallas masks it

    cost = pl.CostEstimate(
        flops=7 * n, transcendentals=2 * n, bytes_accessed=2 * n * itemsize
    )

    return pl.pallas_call(
        partial(_gelu_kernel, approx_recip=approx_recip),
        out_shape=jax.ShapeDtypeStruct((rows, cols), dtype),
        grid_spec=pltpu.PrefetchScalarGridSpec(
            num_scalar_prefetch=0,
            grid=(grid,),
            in_specs=[pl.BlockSpec((block_rows, cols), lambda i: (i, 0))],
            out_specs=pl.BlockSpec((block_rows, cols), lambda i: (i, 0)),
        ),
        compiler_params=pltpu.CompilerParams(
            dimension_semantics=("parallel",),
            vmem_limit_bytes=48 * 1024 * 1024,  # live ~4x block_bytes; safe on v7x's 64 MiB
        ),
        cost_estimate=cost,
    )(x2d)


def my_gelu(x: jax.Array, *, target_block_bytes: int = 4 * 1024 * 1024) -> jax.Array:
    """Elementwise tanh-GELU on an arbitrary-shaped array via Pallas (TPU)."""
    orig_shape = x.shape
    dtype = x.dtype
    if not jnp.issubdtype(dtype, jnp.floating):
        # Original CUDA kernel is float-only; non-float inputs are promoted to f32.
        x = x.astype(jnp.float32)
        dtype = x.dtype
    n = x.size
    if n == 0:
        return jnp.zeros(orig_shape, dtype)

    # Exact reciprocal for f32 (keeps 1e-5 tolerance); EUP approx for bf16/f16.
    approx_recip = jnp.dtype(dtype).itemsize < 4

    cols = _pick_cols(n)
    if cols:
        # Exact divisor found: zero host-side padding, lane-dense output.
        out2d = _run_gelu_2d(x.reshape(n // cols, cols), dtype, approx_recip,
                             target_block_bytes)
        return out2d.reshape(orig_shape)

    # n not a multiple of 128: kernel over the bulk, plain jnp on the small tail.
    # (Avoids whole-array jnp.pad + [:n] slice round-trips through HBM.)
    cols = 128
    x_flat = x.reshape(-1)
    n_bulk = (n // cols) * cols
    if n_bulk == 0:
        # Fewer than one lane-width of data: not worth a kernel launch.
        return _gelu_host(x)
    bulk = _run_gelu_2d(x_flat[:n_bulk].reshape(-1, cols), dtype, approx_recip,
                        target_block_bytes)
    tail = _gelu_host(x_flat[n_bulk:])
    return jnp.concatenate([bulk.reshape(-1), tail]).reshape(orig_shape)


def _gelu_ref(x):
    xf = x.astype(jnp.float32)
    c = math.sqrt(2.0 / math.pi)
    y = 0.5 * xf * (1.0 + jnp.tanh(c * (xf + 0.044715 * xf**3)))
    return y.astype(x.dtype)


if __name__ == "__main__":
    key = jax.random.PRNGKey(0)
    k1, k2, k3, k4, k5 = jax.random.split(key, 5)

    # Small NCHW input consistent with a conv-style module (no-pad fast path).
    x = jax.random.normal(k1, (2, 4, 16, 16), dtype=jnp.float32)
    out = my_gelu(x)
    jax.block_until_ready(out)
    assert out.shape == x.shape and out.dtype == x.dtype
    assert jnp.allclose(out, _gelu_ref(x), atol=1e-5, rtol=1e-5)

    # Medium size: exercises the >=2 grid-step (multi-block) path.
    x_med = jax.random.normal(k2, (4, 256, 512), dtype=jnp.float32)
    out_m = my_gelu(x_med)
    jax.block_until_ready(out_m)
    assert jnp.allclose(out_m, _gelu_ref(x_med), atol=1e-5, rtol=1e-5)

    # Ragged size, > one lane width: exercises the bulk-kernel + jnp-tail path.
    x_rag = jax.random.normal(k3, (5, 131), dtype=jnp.float32)
    out_r = my_gelu(x_rag)
    jax.block_until_ready(out_r)
    assert jnp.allclose(out_r, _gelu_ref(x_rag), atol=1e-5, rtol=1e-5)

    # Tiny ragged size (< 128 elements): pure-jnp fallback path.
    x_tiny = jax.random.normal(k4, (3, 5, 7), dtype=jnp.float32)
    out_t = my_gelu(x_tiny)
    jax.block_until_ready(out_t)
    assert jnp.allclose(out_t, _gelu_ref(x_tiny), atol=1e-5, rtol=1e-5)

    # Native-dtype I/O path (bf16 stays bf16 on the wire, approx reciprocal).
    x_bf16 = jax.random.normal(k5, (2, 4, 16, 16), dtype=jnp.bfloat16)
    out_b = my_gelu(x_bf16)
    jax.block_until_ready(out_b)
    assert out_b.dtype == jnp.bfloat16
    assert jnp.allclose(
        out_b.astype(jnp.float32), _gelu_ref(x_bf16).astype(jnp.float32),
        atol=2e-2, rtol=2e-2,
    )

    print("KERNEL_OK")
</pallas_src>

<mosaic_0001>
module attributes {stable_mosaic.version = 11 : i64} {
  func.func @_gelu_kernel(%arg0: i32, %arg1: memref<1x2048xf32, #tpu.memory_space<vmem>>, %arg2: memref<1x2048xf32, #tpu.memory_space<vmem>>) attributes {dimension_semantics = [#tpu.dimension_semantics<parallel>], iteration_bounds = array<i64: 1>, scalar_prefetch = 0 : i64, scratch_operands = 0 : i64, tpu.core_type = #tpu.core_type<tc>, window_params = [{transform_indices = @transform_0, window_bounds = array<i64: 1, 2048>}, {transform_indices = @transform_1, window_bounds = array<i64: 1, 2048>}]} {
    %c0 = arith.constant 0 : index
    %c0_0 = arith.constant 0 : index
    %0 = vector.load %arg1[%c0, %c0_0] : memref<1x2048xf32, #tpu.memory_space<vmem>>, vector<1x2048xf32>
    %1 = arith.mulf %0, %0 : vector<1x2048xf32>
    %cst = arith.constant -1.59576917 : f32
    %2 = vector.broadcast %cst : f32 to vector<1x2048xf32>
    %3 = arith.mulf %2, %0 : vector<1x2048xf32>
    %4 = arith.mulf %1, %0 : vector<1x2048xf32>
    %cst_1 = arith.constant -0.0713548139 : f32
    %5 = vector.broadcast %cst_1 : f32 to vector<1x2048xf32>
    %6 = arith.mulf %5, %4 : vector<1x2048xf32>
    %7 = arith.addf %3, %6 : vector<1x2048xf32>
    %8 = math.exp %7 : vector<1x2048xf32>
    %cst_2 = arith.constant 1.000000e+00 : f32
    %9 = vector.broadcast %cst_2 : f32 to vector<1x2048xf32>
    %10 = arith.addf %9, %8 : vector<1x2048xf32>
    %11 = tpu.reciprocal %10 : vector<1x2048xf32> -> vector<1x2048xf32>
    %12 = arith.mulf %0, %11 : vector<1x2048xf32>
    %c0_3 = arith.constant 0 : index
    %c0_4 = arith.constant 0 : index
    %13 = vector.load %arg2[%c0_3, %c0_4] : memref<1x2048xf32, #tpu.memory_space<vmem>>, vector<1x2048xf32>
    tpu.vector_store %arg2[%c0_3, %c0_4], %12 {strides = array<i32>} : memref<1x2048xf32, #tpu.memory_space<vmem>>, vector<1x2048xf32>,
    return
  }
  func.func @transform_0(%arg0: i32) -> (i32, i32) {
    %c0_i32 = arith.constant 0 : i32
    %c0_i32_0 = arith.constant 0 : i32
    return %arg0, %c0_i32 : i32, i32
  }
  func.func @transform_1(%arg0: i32) -> (i32, i32) {
    %c0_i32 = arith.constant 0 : i32
    %c0_i32_0 = arith.constant 0 : i32
    return %arg0, %c0_i32 : i32, i32
  }
}

</mosaic_0001>

<llo_original>
// kernel: tpu_custom_call.1
$region0: #{tpu_custom_call.1}
  #allocation0 [shape = 'u32[]', space=smem, size = 0x4, offset = 0x4, fixed_abs, tag = 'smem constant byte address 0x4 - core index']
  #allocation1 [shape = 'u32[144,128]{1,0:T(1,128)}', space=vmem, size = 0x12000, scoped, tag = 'internal scratch']
  %s0 = inlined_call_operand.hbm [shape: f32[1,2048], index: 0, kind: input, shape index: {}]
  %s1 = inlined_call_operand.hbm [shape: f32[1,2048], index: 1, kind: output, shape index: {}]
  %s2 = sld [smem:[#allocation0]]
  $region18: #{tpu_custom_call.1} parent=0
    _
  %s4 = ssub.s32 1, %s2
  %s5 = scalar_select 0, %s4, %s2
  $region1: #{tpu_custom_call.1} parent=0
    #allocation2 [shape = 'u8[8192]{0}', space=vmem, size = 0x2000, scoped, tag = 'input window, operand 0, single buffered']
    #allocation3 [shape = 's32[1]{0}', space=sflag, size = 0x4, scoped, tag = 'scoped memory for tpu_custom_call.1']
    #allocation4 [shape = 's32[1]{0}', space=sflag, size = 0x4, scoped, tag = 'scoped memory for tpu_custom_call.1']
    #allocation5 [shape = 'u8[8192]{0}', space=vmem, size = 0x2000, scoped, tag = 'output window, operand 0, single buffered']
    %6 = vsyncpa [#allocation3], 0
    %7 = vsyncpa [#allocation4], 0
    // Predicated region
    $region2: #{tpu_custom_call.1} parent=1 // pred_check
      _
    $region3: #{tpu_custom_call.1} parent=1 // pred_check_branch
      %9 = sbr.rel (0) target = $region5
    $region4: #{tpu_custom_call.1} parent=1 // pred_region
      %s11 = ssub.s32 256, 256
      %12 = vsyncadd [#allocation3], %s11
      %s14 = sshll.u32 [#allocation2], 4
      %s15 = int_to_ptr.vmem [resolvable:$true] %s14
      %17 = dma.hbm_to_vmem [thread:$0]  %s0, 256, %s15, [#allocation3]
    $region5: #{tpu_custom_call.1} parent=1 // pred_fallthru
      _
    // Predicated region
    $region6: #{tpu_custom_call.1} parent=1 // pred_check
      _
    $region7: #{tpu_custom_call.1} parent=1 // pred_check_branch
      %19 = sbr.rel (0) target = $region9
    $region8: #{tpu_custom_call.1} parent=1 // pred_region
      %20 = dma.done [#allocation3], 256
    $region9: #{tpu_custom_call.1} parent=1 // pred_fallthru
      _
    %v21 = vld [vmem:[#allocation2] sm:$0xff]
    %v22 = vld [vmem:[#allocation2 + $0x8] sm:$0xff]
    %v23 = vmul.f32 %v21, %v21
    %v24 = vmul.f32 %v22, %v22
    %v25 = vmul.f32 %v21, -1.5957692
    %v26 = vmul.f32 %v22, -1.5957692
    %v27 = vmul.f32 %v23, %v21
    %v28 = vmul.f32 %v24, %v22
    %v29 = vmul.f32 %v27, -0.071354814
    %v30 = vmul.f32 %v28, -0.071354814
    %v31 = vadd.f32 %v25, %v29
    %v32 = vadd.f32 %v26, %v30
    %v33 = vmul.f32 %v31, 1.442695
    %v34 = vpow.pop %v33
    %v35 = vmul.f32 %v32, 1.442695
    %v36 = vpow.pop %v35
    %v37 = vadd.f32 %v34, 1.0
    %v38 = vadd.f32 %v36, 1.0
    %v39 = vrcp.pop %v37
    %v40 = vrcp.pop %v38
    %v41 = vmul.f32 %v21, %v39
    %v42 = vmul.f32 %v22, %v40
    %43 = vst [vmem:[#allocation5] sm:$0xff] %v41
    %44 = vst [vmem:[#allocation5 + $0x8] sm:$0xff] %v42
    // Predicated region
    $region10: #{tpu_custom_call.1} parent=1 // pred_check
      _
    $region11: #{tpu_custom_call.1} parent=1 // pred_check_branch
      %46 = sbr.rel (0) target = $region13
    $region12: #{tpu_custom_call.1} parent=1 // pred_region
      %s48 = ssub.s32 256, 256
      %49 = vsyncadd [#allocation4], %s48
      %s51 = sshll.u32 [#allocation5], 4
      %s52 = int_to_ptr.vmem [resolvable:$true] %s51
      %54 = dma.vmem_to_hbm [thread:$0]  %s52, 256, %s1, [#allocation4]
    $region13: #{tpu_custom_call.1} parent=1 // pred_fallthru
      _
    // Predicated region
    $region14: #{tpu_custom_call.1} parent=1 // pred_check
      _
    $region15: #{tpu_custom_call.1} parent=1 // pred_check_branch
      %56 = sbr.rel (0) target = $region17
    $region16: #{tpu_custom_call.1} parent=1 // pred_region
      %57 = dma.done [#allocation4], 256
    $region17: #{tpu_custom_call.1} parent=1 // pred_fallthru
      _
    %58 = vsyncpa [#allocation3], 1
    %59 = vsyncpa [#allocation4], 1

</llo_original>
